<compile_context>
chip_gen: v7x
topology: tpu7x:2x2x1
jax: 0.10.0
libtpu: 0.0.40
codegen_flags: <defaults>
</compile_context>

<pallas_src>
import functools

import jax
import jax.numpy as jnp
from jax.experimental import pallas as pl
from jax.experimental.pallas import tpu as pltpu

LANE = 128


def mean_pool_classifier_kernel(emb_ref, mask_ref, cnt_ref, w_ref, b_ref,
                                out_ref, acc_ref):
    # emb_ref : [tB, tS, H]  native dtype (e.g. bf16)  last_hidden_state tile
    # mask_ref: [tB, tS, 1]  native dtype              attention_mask tile
    # cnt_ref : [tB, 1]      float32                   precomputed mask counts
    # w_ref   : [H, Lp]      bfloat16                  classifier weight (padded, transposed)
    # b_ref   : [1, Lp]      float32                   classifier bias (padded)
    # out_ref : [tB, Lp]     float32                   logits (padded)
    # acc_ref : [tB, H]      float32 scratch           running masked sum
    s = pl.program_id(1)

    @pl.when(s == 0)
    def _():
        acc_ref[...] = jnp.zeros_like(acc_ref)

    # Multiply in the native dtype (mask is exactly 0/1), accumulate in f32.
    prod = emb_ref[...] * mask_ref[...]                        # [tB, tS, H]
    acc_ref[...] += jnp.sum(prod, axis=1, dtype=jnp.float32)   # [tB, H]

    @pl.when(s == pl.num_programs(1) - 1)
    def _():
        cnt = jnp.maximum(cnt_ref[...], 1e-9)                    # torch.clamp(min=1e-9)
        mean = acc_ref[...] * pl.reciprocal(cnt, approx=False)   # [tB, H] f32
        logits = jnp.dot(mean.astype(w_ref.dtype), w_ref[...],
                         preferred_element_type=jnp.float32) + b_ref[...]
        out_ref[...] = logits.astype(out_ref.dtype)


def _round_up(x, m):
    return ((x + m - 1) // m) * m


def _sublane_align(dtype):
    # Rows per packed sublane tile: f32 -> 8, bf16 -> 16, int8/fp8 -> 32.
    return 8 * (4 // jnp.dtype(dtype).itemsize)


def _vmem_capacity_bytes():
    try:
        return int(pltpu.get_tpu_info().vmem_capacity_bytes)
    except Exception:
        return 64 << 20   # conservative fallback: v7x per-TensorCore VMEM


def _choose_tiles(B, S, H, Lp, emb_dtype, tb, ts, vmem_budget):
    ebytes = jnp.dtype(emb_dtype).itemsize
    align = _sublane_align(emb_dtype)

    # ---- batch tile: multiple of 8 (sublane) or the full (padded) batch -----
    # tb=8 keeps >=2 batch blocks (v7x 2-TC sharding) as soon as B >= 16.
    if tb is None:
        tb = B if B <= 8 else 8
    Bp = _round_up(B, tb)
    assert tb % 8 == 0 or tb == Bp, (
        f"tb={tb} must be a multiple of 8 or equal the padded batch {Bp}")

    # ---- seq tile: largest dtype-aligned value fitting the VMEM budget ------
    # Resident / per-batch-block footprint (pipeline double-buffers inputs):
    fixed = (2 * H * Lp * 2          # bf16 weight
             + 2 * Lp * 4            # f32 bias
             + 2 * tb * Lp * 4       # f32 logits block
             + 2 * tb * 4            # f32 counts block
             + tb * H * 4)           # f32 accumulator scratch
    # Per seq-row streaming footprint: 2 pipeline buffers + ~1 compute temp for
    # the emb tile, plus the double-buffered mask column.
    per_row = tb * H * ebytes * 3 + tb * ebytes * 2

    if ts is None:
        avail = int(vmem_budget * 0.85) - fixed
        ts = max(align, min(1024, avail // per_row) // align * align)
        ts = min(ts, _round_up(S, align))
    Sp = _round_up(S, ts)
    assert ts % 8 == 0 or ts == Sp, (
        f"ts={ts} must be a multiple of 8 or equal the padded seq {Sp}")
    return tb, ts, Bp, Sp


def mean_pooling_classifier(token_embeddings, attention_mask, weight, bias,
                            *, tb=None, ts=None):
    """token_embeddings: [B,S,H] (native dtype), attention_mask: [B,S],
    weight: [L,H], bias: [L]. Returns logits [B, L] (float32)."""
    B, S, H = token_embeddings.shape
    L = weight.shape[0]
    Lp = _round_up(max(L, LANE), LANE)   # lane-dense label axis

    cap = _vmem_capacity_bytes()
    vmem_limit = int(cap * 0.7)          # ~90 MiB on v5e/v6e, ~45 MiB on v7x
    tb, ts, Bp, Sp = _choose_tiles(B, S, H, Lp, token_embeddings.dtype,
                                   tb, ts, vmem_limit)

    return _mean_pooling_classifier_impl(
        token_embeddings, attention_mask, weight, bias,
        tb=tb, ts=ts, Bp=Bp, Sp=Sp, Lp=Lp, L=L, vmem_limit=vmem_limit)


@functools.partial(
    jax.jit,
    static_argnames=("tb", "ts", "Bp", "Sp", "Lp", "L", "vmem_limit"))
def _mean_pooling_classifier_impl(token_embeddings, attention_mask, weight,
                                  bias, *, tb, ts, Bp, Sp, Lp, L, vmem_limit):
    B, S, H = token_embeddings.shape
    edtype = token_embeddings.dtype

    # Denominator hoisted out of the kernel: [B, 1] f32 counts (cheap XLA reduce).
    counts = attention_mask.astype(jnp.float32).sum(axis=1, keepdims=True)

    # Mask with S on the sublane axis, in the embeddings' dtype (0/1 is exact).
    mask3d = attention_mask.astype(edtype).reshape(B, S, 1)

    # Ragged handling: zero-pad batch/seq so the grid divides evenly. Zero mask
    # rows contribute nothing; padded batch rows are sliced off below.
    emb = token_embeddings
    if Sp != S or Bp != B:
        emb = jnp.pad(emb, ((0, Bp - B), (0, Sp - S), (0, 0)))
        mask3d = jnp.pad(mask3d, ((0, Bp - B), (0, Sp - S), (0, 0)))
    if Bp != B:
        counts = jnp.pad(counts, ((0, Bp - B), (0, 0)), constant_values=1.0)

    # Classifier params: weight transposed + zero-padded to a full lane tile,
    # stored bf16 (MXU-native operand; accumulation stays f32). Bias stays f32.
    w_pad = jnp.zeros((H, Lp), jnp.bfloat16).at[:, :L].set(
        weight.astype(jnp.bfloat16).T)
    b_pad = jnp.zeros((1, Lp), jnp.float32).at[0, :L].set(
        bias.astype(jnp.float32))

    grid = (Bp // tb, Sp // ts)

    grid_spec = pltpu.PrefetchScalarGridSpec(
        num_scalar_prefetch=0,
        grid=grid,
        in_specs=[
            pl.BlockSpec((tb, ts, H), lambda b, s: (b, s, 0)),  # embeddings stream
            pl.BlockSpec((tb, ts, 1), lambda b, s: (b, s, 0)),  # mask stream
            pl.BlockSpec((tb, 1), lambda b, s: (b, 0)),         # counts (per batch block)
            pl.BlockSpec((H, Lp), lambda b, s: (0, 0)),         # weight resident
            pl.BlockSpec((1, Lp), lambda b, s: (0, 0)),         # bias resident
        ],
        out_specs=pl.BlockSpec((tb, Lp), lambda b, s: (b, 0)),  # resident over seq axis
        scratch_shapes=[
            pltpu.VMEM((tb, H), jnp.float32),   # masked-sum accumulator
        ],
    )

    logits_padded = pl.pallas_call(
        mean_pool_classifier_kernel,
        out_shape=jax.ShapeDtypeStruct((Bp, Lp), jnp.float32),
        grid_spec=grid_spec,
        compiler_params=pltpu.CompilerParams(
            dimension_semantics=("parallel", "arbitrary"),
            vmem_limit_bytes=vmem_limit),
    )(emb, mask3d, counts, w_pad, b_pad)

    return logits_padded[:B, :L]


def _reference(token_embeddings, attention_mask, weight, bias):
    emb = token_embeddings.astype(jnp.float32)
    m = attention_mask.astype(jnp.float32)[:, :, None]
    s = jnp.sum(emb * m, axis=1)
    sm = jnp.maximum(jnp.sum(m, axis=1), 1e-9)
    mean = s / sm
    return mean @ weight.astype(jnp.float32).T + bias.astype(jnp.float32)


if __name__ == "__main__":
    B, S, H, L = 2, 32, 32, 4  # batch, seq, hidden_size, num_labels

    key = jax.random.PRNGKey(0)
    k_emb, k_w, k_b = jax.random.split(key, 3)

    # Deterministic stand-in for base_model(...).last_hidden_state (native bf16:
    # kernel streams bf16 and accumulates in f32).
    token_embeddings = jax.random.normal(
        k_emb, (B, S, H), dtype=jnp.float32).astype(jnp.bfloat16)
    # attention_mask with some padding (last 5 tokens of sample 1 masked out)
    attention_mask = jnp.array(
        [[1] * S, [1] * (S - 5) + [0] * 5], dtype=jnp.int32)

    # nn.Linear(hidden_size, num_labels) parameters, deterministic init
    weight = jax.random.normal(k_w, (L, H), dtype=jnp.float32) * 0.02
    bias = jax.random.normal(k_b, (L,), dtype=jnp.float32) * 0.02

    # ts=16 (bf16 sublane-packed alignment) -> 2 sequence grid steps,
    # exercising the pipelined accumulate path.
    logits = mean_pooling_classifier(
        token_embeddings, attention_mask, weight, bias, ts=16)
    logits = jax.block_until_ready(logits)

    ref = _reference(token_embeddings, attention_mask, weight, bias)
    assert logits.shape == (B, L)
    # Classifier matmul uses bf16 operands (f32 accumulation) -> tiny precision
    # delta vs the all-f32 reference; pooling path is numerically identical.
    assert jnp.allclose(logits, ref, atol=2e-3, rtol=1e-3), (
        f"max abs err {jnp.max(jnp.abs(logits - ref))}")

    print("KERNEL_OK")
</pallas_src>

<mosaic_0001>
module attributes {stable_mosaic.version = 11 : i64} {
  func.func @mean_pool_classifier_kernel(%arg0: i32, %arg1: i32, %arg2: memref<2x16x32xbf16, #tpu.memory_space<vmem>>, %arg3: memref<2x16x1xbf16, #tpu.memory_space<vmem>>, %arg4: memref<2x1xf32, #tpu.memory_space<vmem>>, %arg5: memref<32x128xbf16, #tpu.memory_space<vmem>>, %arg6: memref<1x128xf32, #tpu.memory_space<vmem>>, %arg7: memref<2x128xf32, #tpu.memory_space<vmem>>, %arg8: memref<2x32xf32, #tpu.memory_space<vmem>>) attributes {dimension_semantics = [#tpu.dimension_semantics<parallel>, #tpu.dimension_semantics<arbitrary>], iteration_bounds = array<i64: 1, 2>, scalar_prefetch = 0 : i64, scratch_operands = 1 : i64, tpu.core_type = #tpu.core_type<tc>, window_params = [{transform_indices = @transform_0, window_bounds = array<i64: 2, 16, 32>}, {transform_indices = @transform_1, window_bounds = array<i64: 2, 16, 1>}, {transform_indices = @transform_2, window_bounds = array<i64: 2, 1>}, {pipeline_mode = #tpu.pipeline_mode<synchronous>, transform_indices = @transform_3, window_bounds = array<i64: 32, 128>}, {pipeline_mode = #tpu.pipeline_mode<synchronous>, transform_indices = @transform_4, window_bounds = array<i64: 1, 128>}, {transform_indices = @transform_5, window_bounds = array<i64: 2, 128>}]} {
    %c0_i32 = arith.constant 0 : i32
    %0 = arith.cmpi eq, %arg1, %c0_i32 : i32
    %1 = arith.extui %0 : i1 to i32
    %c0_i32_0 = arith.constant 0 : i32
    %2 = arith.cmpi ne, %1, %c0_i32_0 : i32
    scf.if %2 {
      %cst_11 = arith.constant 0.000000e+00 : f32
      %15 = vector.broadcast %cst_11 : f32 to vector<2x32xf32>
      %c0_12 = arith.constant 0 : index
      %c0_13 = arith.constant 0 : index
      %16 = vector.load %arg8[%c0_12, %c0_13] : memref<2x32xf32, #tpu.memory_space<vmem>>, vector<2x32xf32>
      tpu.vector_store %arg8[%c0_12, %c0_13], %15 {strides = array<i32>} : memref<2x32xf32, #tpu.memory_space<vmem>>, vector<2x32xf32>,
    } else {
    }
    %c0 = arith.constant 0 : index
    %c0_1 = arith.constant 0 : index
    %c0_2 = arith.constant 0 : index
    %3 = vector.load %arg2[%c0, %c0_1, %c0_2] : memref<2x16x32xbf16, #tpu.memory_space<vmem>>, vector<2x16x32xbf16>
    %c0_3 = arith.constant 0 : index
    %c0_4 = arith.constant 0 : index
    %c0_5 = arith.constant 0 : index
    %4 = vector.load %arg3[%c0_3, %c0_4, %c0_5] : memref<2x16x1xbf16, #tpu.memory_space<vmem>>, vector<2x16x1xbf16>
    %5 = vector.broadcast %4 : vector<2x16x1xbf16> to vector<2x16x32xbf16>
    %6 = arith.mulf %3, %5 : vector<2x16x32xbf16>
    %c0_6 = arith.constant 0 : index
    %c0_7 = arith.constant 0 : index
    %7 = vector.load %arg8[%c0_6, %c0_7] : memref<2x32xf32, #tpu.memory_space<vmem>>, vector<2x32xf32>
    %8 = arith.extf %6 : vector<2x16x32xbf16> to vector<2x16x32xf32>
    %cst = arith.constant dense<0.000000e+00> : vector<2x32xf32>
    %9 = vector.multi_reduction <add>, %8, %cst [1] : vector<2x16x32xf32> to vector<2x32xf32>
    %10 = arith.addf %7, %9 : vector<2x32xf32>
    %c0_8 = arith.constant 0 : index
    %c0_9 = arith.constant 0 : index
    %11 = vector.load %arg8[%c0_8, %c0_9] : memref<2x32xf32, #tpu.memory_space<vmem>>, vector<2x32xf32>
    tpu.vector_store %arg8[%c0_8, %c0_9], %10 {strides = array<i32>} : memref<2x32xf32, #tpu.memory_space<vmem>>, vector<2x32xf32>,
    %c1_i32 = arith.constant 1 : i32
    %12 = arith.cmpi eq, %arg1, %c1_i32 : i32
    %13 = arith.extui %12 : i1 to i32
    %c0_i32_10 = arith.constant 0 : i32
    %14 = arith.cmpi ne, %13, %c0_i32_10 : i32
    scf.if %14 {
      %c0_11 = arith.constant 0 : index
      %c0_12 = arith.constant 0 : index
      %15 = vector.load %arg4[%c0_11, %c0_12] : memref<2x1xf32, #tpu.memory_space<vmem>>, vector<2x1xf32>
      %cst_13 = arith.constant 9.99999971E-10 : f32
      %16 = vector.broadcast %cst_13 : f32 to vector<2x1xf32>
      %17 = arith.maximumf %15, %16 : vector<2x1xf32>
      %c0_14 = arith.constant 0 : index
      %c0_15 = arith.constant 0 : index
      %18 = vector.load %arg8[%c0_14, %c0_15] : memref<2x32xf32, #tpu.memory_space<vmem>>, vector<2x32xf32>
      %19 = tpu.reciprocal %17 : vector<2x1xf32> -> vector<2x1xf32>
      %20 = vector.broadcast %19 : vector<2x1xf32> to vector<2x32xf32>
      %21 = arith.mulf %18, %20 : vector<2x32xf32>
      %22 = arith.truncf %21 : vector<2x32xf32> to vector<2x32xbf16>
      %c0_16 = arith.constant 0 : index
      %c0_17 = arith.constant 0 : index
      %23 = vector.load %arg5[%c0_16, %c0_17] : memref<32x128xbf16, #tpu.memory_space<vmem>>, vector<32x128xbf16>
      %cst_18 = arith.constant dense<0.000000e+00> : vector<2x128xf32>
      %24 = tpu.matmul %22, %23, %cst_18 {dimension_numbers = #tpu.dot_dimension_numbers<[1], [0], [0], [1], [0, 0, 1, 1], [], []>} : vector<2x32xbf16>, vector<32x128xbf16>, vector<2x128xf32> -> vector<2x128xf32>
      %c0_19 = arith.constant 0 : index
      %c0_20 = arith.constant 0 : index
      %25 = vector.load %arg6[%c0_19, %c0_20] : memref<1x128xf32, #tpu.memory_space<vmem>>, vector<1x128xf32>
      %26 = vector.broadcast %25 : vector<1x128xf32> to vector<2x128xf32>
      %27 = arith.addf %24, %26 : vector<2x128xf32>
      %c0_21 = arith.constant 0 : index
      %c0_22 = arith.constant 0 : index
      %28 = vector.load %arg7[%c0_21, %c0_22] : memref<2x128xf32, #tpu.memory_space<vmem>>, vector<2x128xf32>
      tpu.vector_store %arg7[%c0_21, %c0_22], %27 {strides = array<i32>} : memref<2x128xf32, #tpu.memory_space<vmem>>, vector<2x128xf32>,
    } else {
    }
    return
  }
  func.func @transform_0(%arg0: i32, %arg1: i32) -> (i32, i32, i32) {
    %c0_i32 = arith.constant 0 : i32
    %c0_i32_0 = arith.constant 0 : i32
    return %arg0, %arg1, %c0_i32 : i32, i32, i32
  }
  func.func @transform_1(%arg0: i32, %arg1: i32) -> (i32, i32, i32) {
    %c0_i32 = arith.constant 0 : i32
    %c0_i32_0 = arith.constant 0 : i32
    return %arg0, %arg1, %c0_i32 : i32, i32, i32
  }
  func.func @transform_2(%arg0: i32, %arg1: i32) -> (i32, i32) {
    %c0_i32 = arith.constant 0 : i32
    %c0_i32_0 = arith.constant 0 : i32
    return %arg0, %c0_i32 : i32, i32
  }
  func.func @transform_3(%arg0: i32, %arg1: i32) -> (i32, i32) {
    %c0_i32 = arith.constant 0 : i32
    %c0_i32_0 = arith.constant 0 : i32
    %c0_i32_1 = arith.constant 0 : i32
    return %c0_i32, %c0_i32_0 : i32, i32
  }
  func.func @transform_4(%arg0: i32, %arg1: i32) -> (i32, i32) {
    %c0_i32 = arith.constant 0 : i32
    %c0_i32_0 = arith.constant 0 : i32
    %c0_i32_1 = arith.constant 0 : i32
    return %c0_i32, %c0_i32_0 : i32, i32
  }
  func.func @transform_5(%arg0: i32, %arg1: i32) -> (i32, i32) {
    %c0_i32 = arith.constant 0 : i32
    %c0_i32_0 = arith.constant 0 : i32
    return %arg0, %c0_i32 : i32, i32
  }
}

</mosaic_0001>

<llo_original>
// kernel: _mean_pooling_classifier_impl.1
$region0: #{_mean_pooling_classifier_impl.1}
  #allocation0 [shape = 'u32[]', space=smem, size = 0x4, offset = 0x4, fixed_abs, tag = 'smem constant byte address 0x4 - core index']
  #allocation1 [shape = 'u32[144,128]{1,0:T(1,128)}', space=vmem, size = 0x12000, scoped, tag = 'internal scratch']
  #allocation2 [shape = 'f32[2,32]{1,0:T(2,128)}', space=vmem, size = 0x400, scoped, tag = 'scratch operand']
  %s0 = inlined_call_operand.vmem [shape: bf16[2,32,32], index: 0, kind: input, shape index: {}]
  %s1 = inlined_call_operand.vmem [shape: bf16[2,32,1], index: 1, kind: input, shape index: {}]
  %s2 = inlined_call_operand.vmem [shape: f32[2,1], index: 2, kind: input, shape index: {}]
  %s3 = inlined_call_operand.vmem [shape: bf16[32,128], index: 3, kind: input, shape index: {}]
  %s4 = inlined_call_operand.vmem [shape: f32[1,128], index: 4, kind: input, shape index: {}]
  %s5 = inlined_call_operand.hbm [shape: f32[2,128], index: 5, kind: output, shape index: {}]
  %s6 = sld [smem:[#allocation0]]
  $region143: #{_mean_pooling_classifier_impl.1} parent=0
    _
  %s8 = ssub.s32 1, %s6
  %s9 = scalar_select 0, %s8, %s6
  $region1: #{_mean_pooling_classifier_impl.1} parent=0
    #allocation3 [shape = 'u8[16384]{0}', space=vmem, size = 0x4000, scoped, tag = 'input window, operand 0']
    #allocation4 [shape = 'u8[16384]{0}', space=vmem, size = 0x4000, scoped, tag = 'input window, operand 1']
    #allocation5 [shape = 'u8[1024]{0}', space=vmem, size = 0x400, scoped, tag = 'output window, operand 0, single buffered']
    #allocation6 [shape = 's32[2]{0}', space=sflag, size = 0x8, scoped, tag = 'scoped memory for _mean_pooling_classifier_impl.1']
    %10 = vsyncpa [#allocation6], 0
    loop: start=0, step=1, limit=4
    $region2: #{_mean_pooling_classifier_impl.1} parent=1 // loop_pre_header
      _
    $region3: #{_mean_pooling_classifier_impl.1} parent=1 // loop_header
      %s12 = sphi 0, %s16
      %p13 = scmp.ge.s32.totalorder %s12, 4
      %s19 = sphi 0, %s31
      %s20 = sphi 0, %s27
      %s21 = sphi 0, %s19
      %s22 = sphi 0, %s20
      %s23 = sphi 0, %s21
      %s24 = sphi 0, %s22
      %s36 = sphi 0, %s38
      %s39 = sphi 0, %s36
      %s40 = sphi 0, %s39
      %s56 = sphi 0, %s40
      %s64 = sphi 0, %s66
      %s67 = sphi 0, %s64
      %s68 = sphi 0, %s67
      %s84 = sphi 0, %s68
      %s90 = sphi 0, %s92
      %s93 = sphi 0, %s90
      %s94 = sphi 0, %s93
      %s110 = sphi 0, %s94
      %s114 = sphi 0, %s114
      %s116 = sphi 0, %s114
      %s117 = sphi 0, %s116
      %s131 = sphi 0, %s117
      %s135 = sphi 0, %s135
      %s137 = sphi 0, %s135
      %s138 = sphi 0, %s137
      %s152 = sphi 0, %s138
      %s158 = sphi 0, %s160
      %s161 = sphi 0, %s158
      %s162 = sphi 0, %s161
      %s178 = sphi 0, %s162
    $region4: #{_mean_pooling_classifier_impl.1} parent=1 // loop_header_branch
      %15 = sbr.rel (%p13) target = $region8
    $region5: #{_mean_pooling_classifier_impl.1} parent=1 // loop_body
      %s17 = ssub.s32 %s12, 1
      %s18 = ssub.s32 %s12, 2
      %s25 = sadd.s32 1, %s20
      %p26 = scmp.ge.s32.totalorder %s25, 2
      %s27 = scalar_select %p26, 0, %s25
      %s28 = sadd.s32 1, %s19
      %s29 = scalar_select %p26, %s28, %s19
      %p30 = scmp.ge.s32.totalorder %s29, 1
      %s31 = scalar_select %p30, 0, %s29
      %s32 = ssub.s32 %s19, %s31
      %s33 = ssub.s32 %s20, %s27
      %s34 = sor.u32 %s32, %s33
      %p35 = scmp.eq.s32.totalorder %s34, 0
      %s37 = sadd.s32 %s36, 1
      %s38 = scalar_select %p35, %s36, %s37
      %p41 = pneg %p35
      %p42 = scmp.eq.s32.totalorder %s12, 1
      %p43 = por %p41, %p42
      %p44 = scmp.ne.s32.totalorder %s36, %s39
      %p45 = scmp.eq.s32.totalorder %s12, 0
      %p46 = por %p44, %p45
      %p47 = scmp.ne.s32.totalorder %s36, %s39
      %p48 = scmp.eq.s32.totalorder %s17, 1
      %p49 = por %p47, %p48
      %p50 = scmp.ne.s32.totalorder %s39, %s40
      %p51 = scmp.eq.s32.totalorder %s17, 0
      %p52 = por %p50, %p51
      %p53 = scmp.ne.s32.totalorder %s39, %s40
      %p54 = scmp.eq.s32.totalorder %s18, 1
      %p55 = por %p53, %p54
      %p57 = scmp.ne.s32.totalorder %s40, %s56
      %p58 = scmp.eq.s32.totalorder %s18, 0
      %p59 = por %p57, %p58
      %s60 = ssub.s32 %s19, %s31
      %s61 = ssub.s32 %s20, %s27
      %s62 = sor.u32 %s60, %s61
      %p63 = scmp.eq.s32.totalorder %s62, 0
      %s65 = sadd.s32 %s64, 1
      %s66 = scalar_select %p63, %s64, %s65
      %p69 = pneg %p63
      %p70 = scmp.eq.s32.totalorder %s12, 1
      %p71 = por %p69, %p70
      %p72 = scmp.ne.s32.totalorder %s64, %s67
      %p73 = scmp.eq.s32.totalorder %s12, 0
      %p74 = por %p72, %p73
      %p75 = scmp.ne.s32.totalorder %s64, %s67
      %p76 = scmp.eq.s32.totalorder %s17, 1
      %p77 = por %p75, %p76
      %p78 = scmp.ne.s32.totalorder %s67, %s68
      %p79 = scmp.eq.s32.totalorder %s17, 0
      %p80 = por %p78, %p79
      %p81 = scmp.ne.s32.totalorder %s67, %s68
      %p82 = scmp.eq.s32.totalorder %s18, 1
      %p83 = por %p81, %p82
      %p85 = scmp.ne.s32.totalorder %s68, %s84
      %p86 = scmp.eq.s32.totalorder %s18, 0
      %p87 = por %p85, %p86
      %s88 = ssub.s32 %s19, %s31
      %p89 = scmp.eq.s32.totalorder %s88, 0
      %s91 = sadd.s32 %s90, 1
      %s92 = scalar_select %p89, %s90, %s91
      %p95 = pneg %p89
      %p96 = scmp.eq.s32.totalorder %s12, 1
      %p97 = por %p95, %p96
      %p98 = scmp.ne.s32.totalorder %s90, %s93
      %p99 = scmp.eq.s32.totalorder %s12, 0
      %p100 = por %p98, %p99
      %p101 = scmp.ne.s32.totalorder %s90, %s93
      %p102 = scmp.eq.s32.totalorder %s17, 1
      %p103 = por %p101, %p102
      %p104 = scmp.ne.s32.totalorder %s93, %s94
      %p105 = scmp.eq.s32.totalorder %s17, 0
      %p106 = por %p104, %p105
      %p107 = scmp.ne.s32.totalorder %s93, %s94
      %p108 = scmp.eq.s32.totalorder %s18, 1
      %p109 = por %p107, %p108
      %p111 = scmp.ne.s32.totalorder %s94, %s110
      %p112 = scmp.eq.s32.totalorder %s18, 0
      %p113 = por %p111, %p112
      %s115 = sadd.s32 %s114, 1
      %p118 = scmp.eq.s32.totalorder %s12, 1
      %p119 = scmp.ne.s32.totalorder %s114, %s116
      %p120 = scmp.eq.s32.totalorder %s12, 0
      %p121 = por %p119, %p120
      %p122 = scmp.ne.s32.totalorder %s114, %s116
      %p123 = scmp.eq.s32.totalorder %s17, 1
      %p124 = por %p122, %p123
      %p125 = scmp.ne.s32.totalorder %s116, %s117
      %p126 = scmp.eq.s32.totalorder %s17, 0
      %p127 = por %p125, %p126
      %p128 = scmp.ne.s32.totalorder %s116, %s117
      %p129 = scmp.eq.s32.totalorder %s18, 1
      %p130 = por %p128, %p129
      %p132 = scmp.ne.s32.totalorder %s117, %s131
      %p133 = scmp.eq.s32.totalorder %s18, 0
      %p134 = por %p132, %p133
      %s136 = sadd.s32 %s135, 1
      %p139 = scmp.eq.s32.totalorder %s12, 1
      %p140 = scmp.ne.s32.totalorder %s135, %s137
      %p141 = scmp.eq.s32.totalorder %s12, 0
      %p142 = por %p140, %p141
      %p143 = scmp.ne.s32.totalorder %s135, %s137
      %p144 = scmp.eq.s32.totalorder %s17, 1
      %p145 = por %p143, %p144
      %p146 = scmp.ne.s32.totalorder %s137, %s138
      %p147 = scmp.eq.s32.totalorder %s17, 0
      %p148 = por %p146, %p147
      %p149 = scmp.ne.s32.totalorder %s137, %s138
      %p150 = scmp.eq.s32.totalorder %s18, 1
      %p151 = por %p149, %p150
      %p153 = scmp.ne.s32.totalorder %s138, %s152
      %p154 = scmp.eq.s32.totalorder %s18, 0
      %p155 = por %p153, %p154
      %s156 = ssub.s32 %s19, %s31
      %p157 = scmp.eq.s32.totalorder %s156, 0
      %s159 = sadd.s32 %s158, 1
      %s160 = scalar_select %p157, %s158, %s159
      %p163 = pneg %p157
      %p164 = scmp.eq.s32.totalorder %s12, 1
      %p165 = por %p163, %p164
      %p166 = scmp.ne.s32.totalorder %s158, %s161
      %p167 = scmp.eq.s32.totalorder %s12, 0
      %p168 = por %p166, %p167
      %p169 = scmp.ne.s32.totalorder %s158, %s161
      %p170 = scmp.eq.s32.totalorder %s17, 1
      %p171 = por %p169, %p170
      %p172 = scmp.ne.s32.totalorder %s161, %s162
      %p173 = scmp.eq.s32.totalorder %s17, 0
      %p174 = por %p172, %p173
      %p175 = scmp.ne.s32.totalorder %s161, %s162
      %p176 = scmp.eq.s32.totalorder %s18, 1
      %p177 = por %p175, %p176
      %p179 = scmp.ne.s32.totalorder %s162, %s178
      %p180 = scmp.eq.s32.totalorder %s18, 0
      %p181 = por %p179, %p180
      %p182 = scmp.le.s32.totalorder 1, %s12
      %p183 = scmp.lt.s32.totalorder %s12, 3
      %p184 = pnand %p182, %p183
      %p185 = pneg %p184
      // Predicated region
      $region9: #{_mean_pooling_classifier_impl.1} parent=5 // pred_check
        _
      $region10: #{_mean_pooling_classifier_impl.1} parent=5 // pred_check_branch
        %187 = sbr.rel (%p184) target = $region12
      $region11: #{_mean_pooling_classifier_impl.1} parent=5 // pred_region
        %s188 = ssub.s32 %s12, 1
        // Predicated region
        $region13: #{_mean_pooling_classifier_impl.1} parent=11 // pred_check
          %p189 = pneg %p106
        $region14: #{_mean_pooling_classifier_impl.1} parent=11 // pred_check_branch
          %191 = sbr.rel (%p189) target = $region16
        $region15: #{_mean_pooling_classifier_impl.1} parent=11 // pred_region
          %p192 = scmp.lt.s32.totalorder %s21, 0
          %s193 = scalar_select %p192, %s21, 0
          %s194 = smul.addr %s193, 2
          %s195 = scalar_lea.vmem %s2, %s194
        $region16: #{_mean_pooling_classifier_impl.1} parent=11 // pred_fallthru
          _
        // Predicated region
        $region17: #{_mean_pooling_classifier_impl.1} parent=11 // pred_check
          %p196 = pneg %p127
        $region18: #{_mean_pooling_classifier_impl.1} parent=11 // pred_check_branch
          %198 = sbr.rel (%p196) target = $region20
        $region19: #{_mean_pooling_classifier_impl.1} parent=11 // pred_region
          _
        $region20: #{_mean_pooling_classifier_impl.1} parent=11 // pred_fallthru
          _
        // Predicated region
        $region21: #{_mean_pooling_classifier_impl.1} parent=11 // pred_check
          %p199 = pneg %p148
        $region22: #{_mean_pooling_classifier_impl.1} parent=11 // pred_check_branch
          %201 = sbr.rel (%p199) target = $region24
        $region23: #{_mean_pooling_classifier_impl.1} parent=11 // pred_region
          _
        $region24: #{_mean_pooling_classifier_impl.1} parent=11 // pred_fallthru
          _
      $region12: #{_mean_pooling_classifier_impl.1} parent=5 // pred_fallthru
        _
      %p202 = scmp.lt.s32.totalorder %s12, 2
      // Predicated region
      $region25: #{_mean_pooling_classifier_impl.1} parent=5 // pred_check
        %p203 = pneg %p202
      $region26: #{_mean_pooling_classifier_impl.1} parent=5 // pred_check_branch
        %205 = sbr.rel (%p203) target = $region28
      $region27: #{_mean_pooling_classifier_impl.1} parent=5 // pred_region
        // Predicated region
        $region29: #{_mean_pooling_classifier_impl.1} parent=27 // pred_check
          %p206 = pneg %p46
        $region30: #{_mean_pooling_classifier_impl.1} parent=27 // pred_check_branch
          %208 = sbr.rel (%p206) target = $region32
        $region31: #{_mean_pooling_classifier_impl.1} parent=27 // pred_region
          %s209 = sand.u32 %s36, 1
          %s210 = sand.u32 %s36, 1
          %s211 = smul.addr %s210, 16
          %s212 = scalar_lea.vmem [#allocation3], %s211
          %s213 = smul.u32 2, %s19
          %s214 = smul.u32 2, %s20
          %s215 = smul.addr %s213, 4
          %s216 = sadd.s32 %s214, %s215
          %s217 = smul.addr %s216, 4
          %s218 = scalar_lea.vmem %s0, %s217
          // Predicated region
          $region33: #{_mean_pooling_classifier_impl.1} parent=31 // pred_check
            _
          $region34: #{_mean_pooling_classifier_impl.1} parent=31 // pred_check_branch
            %220 = sbr.rel (0) target = $region36
          $region35: #{_mean_pooling_classifier_impl.1} parent=31 // pred_region
            // Predicated region
            $region37: #{_mean_pooling_classifier_impl.1} parent=35 // pred_check
              _
            $region38: #{_mean_pooling_classifier_impl.1} parent=35 // pred_check_branch
              %222 = sbr.rel target = $region40
            $region39: #{_mean_pooling_classifier_impl.1} parent=35 // pred_region
              // Predicated region
              $region52: #{_mean_pooling_classifier_impl.1} parent=39 // pred_check
                _
              $region53: #{_mean_pooling_classifier_impl.1} parent=39 // pred_check_branch
                %243 = sbr.rel (0) target = $region55
              $region54: #{_mean_pooling_classifier_impl.1} parent=39 // pred_region
                loop: start=0, step=1, limit=1
                $region56: #{_mean_pooling_classifier_impl.1} parent=54 // loop_pre_header
                  _
                $region57: #{_mean_pooling_classifier_impl.1} parent=54 // loop_header
                  %s245 = sphi 0, %s249
                  %p246 = scmp.ge.s32.totalorder %s245, 1
                  %s250 = sphi %s218, %s218
                  %s251 = sphi %s212, %s212
                $region58: #{_mean_pooling_classifier_impl.1} parent=54 // loop_header_branch
                  %248 = sbr.rel (%p246) target = $region62
                $region59: #{_mean_pooling_classifier_impl.1} parent=54 // loop_body
                  _
                $region60: #{_mean_pooling_classifier_impl.1} parent=54 // loop_footer
                  %s249 = sadd.s32 1, %s245
                $region61: #{_mean_pooling_classifier_impl.1} parent=54 // loop_footer_branch
                  %244 = sbr.rel target = $region57
                $region62: #{_mean_pooling_classifier_impl.1} parent=54 // loop_exit
                  _
                loop: start=0, step=1, limit=1
                $region63: #{_mean_pooling_classifier_impl.1} parent=54 // loop_pre_header
                  _
                $region64: #{_mean_pooling_classifier_impl.1} parent=54 // loop_header
                  %s254 = sphi 0, %s258
                  %p255 = scmp.ge.s32.totalorder %s254, 1
                  %s259 = sphi %s218, %s218
                  %s260 = sphi %s212, %s212
                $region65: #{_mean_pooling_classifier_impl.1} parent=54 // loop_header_branch
                  %257 = sbr.rel (%p255) target = $region69
                $region66: #{_mean_pooling_classifier_impl.1} parent=54 // loop_body
                  %v261 = vld [vmem:[%s259] sm:$0xf]
                  %262 = vst [vmem:[%s260] sm:$0xf] %v261
                  %v263 = vld [vmem:[%s259 + $0x4] sm:$0xf]
                  %264 = vst [vmem:[%s260 + $0x4] sm:$0xf] %v263
                  %v265 = vld [vmem:[%s259 + $0x10] sm:$0xf]
                  %266 = vst [vmem:[%s260 + $0x8] sm:$0xf] %v265
                  %v267 = vld [vmem:[%s259 + $0x14] sm:$0xf]
                  %268 = vst [vmem:[%s260 + $0xc] sm:$0xf] %v267
                $region67: #{_mean_pooling_classifier_impl.1} parent=54 // loop_footer
                  %s258 = sadd.s32 1, %s254
                $region68: #{_mean_pooling_classifier_impl.1} parent=54 // loop_footer_branch
                  %253 = sbr.rel target = $region64
                $region69: #{_mean_pooling_classifier_impl.1} parent=54 // loop_exit
                  _
              $region55: #{_mean_pooling_classifier_impl.1} parent=39 // pred_fallthru
                _
            $region40: #{_mean_pooling_classifier_impl.1} parent=35 // pred_fallthru
              _
            // Predicated region
            $region41: #{_mean_pooling_classifier_impl.1} parent=35 // pred_check
              _
            $region42: #{_mean_pooling_classifier_impl.1} parent=35 // pred_check_branch
              %224 = sbr.rel (0) target = $region44
            $region43: #{_mean_pooling_classifier_impl.1} parent=35 // pred_region
              loop: start=0, step=1, limit=1
              $region45: #{_mean_pooling_classifier_impl.1} parent=43 // loop_pre_header
                _
              $region46: #{_mean_pooling_classifier_impl.1} parent=43 // loop_header
                %s227 = sphi 0, %s231
                %p228 = scmp.ge.s32.totalorder %s227, 1
                %s232 = sphi %s218, %s218
                %s233 = sphi %s212, %s212
              $region47: #{_mean_pooling_classifier_impl.1} parent=43 // loop_header_branch
                %230 = sbr.rel (%p228) target = $region51
              $region48: #{_mean_pooling_classifier_impl.1} parent=43 // loop_body
                %v234 = vld [vmem:[%s232] sm:$0xf]
                %235 = vst [vmem:[%s233] sm:$0xf] %v234
                %v236 = vld [vmem:[%s232 + $0x4] sm:$0xf]
                %237 = vst [vmem:[%s233 + $0x4] sm:$0xf] %v236
                %v238 = vld [vmem:[%s232 + $0x10] sm:$0xf]
                %239 = vst [vmem:[%s233 + $0x8] sm:$0xf] %v238
                %v240 = vld [vmem:[%s232 + $0x14] sm:$0xf]
                %241 = vst [vmem:[%s233 + $0xc] sm:$0xf] %v240
              $region49: #{_mean_pooling_classifier_impl.1} parent=43 // loop_footer
                %s231 = sadd.s32 1, %s227
              $region50: #{_mean_pooling_classifier_impl.1} parent=43 // loop_footer_branch
                %226 = sbr.rel target = $region46
              $region51: #{_mean_pooling_classifier_impl.1} parent=43 // loop_exit
                _
            $region44: #{_mean_pooling_classifier_impl.1} parent=35 // pred_fallthru
              _
          $region36: #{_mean_pooling_classifier_impl.1} parent=31 // pred_fallthru
            _
          %269 = vnop
        $region32: #{_mean_pooling_classifier_impl.1} parent=27 // pred_fallthru
          _
        // Predicated region
        $region70: #{_mean_pooling_classifier_impl.1} parent=27 // pred_check
          %p270 = pneg %p74
        $region71: #{_mean_pooling_classifier_impl.1} parent=27 // pred_check_branch
          %272 = sbr.rel (%p270) target = $region73
        $region72: #{_mean_pooling_classifier_impl.1} parent=27 // pred_region
          %s273 = sand.u32 %s64, 1
          %s274 = sand.u32 %s64, 1
          %s275 = smul.addr %s274, 16
          %s276 = scalar_lea.vmem [#allocation4], %s275
          %s277 = smul.u32 2, %s19
          %s278 = smul.u32 2, %s20
          %s279 = smul.addr %s277, 4
          %s280 = sadd.s32 %s278, %s279
          %s281 = smul.addr %s280, 4
          %s282 = scalar_lea.vmem %s1, %s281
          // Predicated region
          $region74: #{_mean_pooling_classifier_impl.1} parent=72 // pred_check
            _
          $region75: #{_mean_pooling_classifier_impl.1} parent=72 // pred_check_branch
            %284 = sbr.rel (0) target = $region77
          $region76: #{_mean_pooling_classifier_impl.1} parent=72 // pred_region
            // Predicated region
            $region78: #{_mean_pooling_classifier_impl.1} parent=76 // pred_check
              _
            $region79: #{_mean_pooling_classifier_impl.1} parent=76 // pred_check_branch
              %286 = sbr.rel target = $region81
            $region80: #{_mean_pooling_classifier_impl.1} parent=76 // pred_region
              // Predicated region
              $region93: #{_mean_pooling_classifier_impl.1} parent=80 // pred_check
                _
              $region94: #{_mean_pooling_classifier_impl.1} parent=80 // pred_check_branch
                %307 = sbr.rel (0) target = $region96
              $region95: #{_mean_pooling_classifier_impl.1} parent=80 // pred_region
                loop: start=0, step=1, limit=1
                $region97: #{_mean_pooling_classifier_impl.1} parent=95 // loop_pre_header
                  _
                $region98: #{_mean_pooling_classifier_impl.1} parent=95 // loop_header
                  %s309 = sphi 0, %s313
                  %p310 = scmp.ge.s32.totalorder %s309, 1
                  %s314 = sphi %s282, %s282
                  %s315 = sphi %s276, %s276
                $region99: #{_mean_pooling_classifier_impl.1} parent=95 // loop_header_branch
                  %312 = sbr.rel (%p310) target = $region103
                $region100: #{_mean_pooling_classifier_impl.1} parent=95 // loop_body
                  _
                $region101: #{_mean_pooling_classifier_impl.1} parent=95 // loop_footer
                  %s313 = sadd.s32 1, %s309
                $region102: #{_mean_pooling_classifier_impl.1} parent=95 // loop_footer_branch
                  %308 = sbr.rel target = $region98
                $region103: #{_mean_pooling_classifier_impl.1} parent=95 // loop_exit
                  _
                loop: start=0, step=1, limit=1
                $region104: #{_mean_pooling_classifier_impl.1} parent=95 // loop_pre_header
                  _
                $region105: #{_mean_pooling_classifier_impl.1} parent=95 // loop_header
                  %s318 = sphi 0, %s322
                  %p319 = scmp.ge.s32.totalorder %s318, 1
                  %s323 = sphi %s282, %s282
                  %s324 = sphi %s276, %s276
                $region106: #{_mean_pooling_classifier_impl.1} parent=95 // loop_header_branch
                  %321 = sbr.rel (%p319) target = $region110
                $region107: #{_mean_pooling_classifier_impl.1} parent=95 // loop_body
                  %v325 = vld [vmem:[%s323] sm:$0xf]
                  %326 = vst [vmem:[%s324] sm:$0xf] %v325
                  %v327 = vld [vmem:[%s323 + $0x4] sm:$0xf]
                  %328 = vst [vmem:[%s324 + $0x4] sm:$0xf] %v327
                  %v329 = vld [vmem:[%s323 + $0x10] sm:$0xf]
                  %330 = vst [vmem:[%s324 + $0x8] sm:$0xf] %v329
                  %v331 = vld [vmem:[%s323 + $0x14] sm:$0xf]
                  %332 = vst [vmem:[%s324 + $0xc] sm:$0xf] %v331
                $region108: #{_mean_pooling_classifier_impl.1} parent=95 // loop_footer
                  %s322 = sadd.s32 1, %s318
                $region109: #{_mean_pooling_classifier_impl.1} parent=95 // loop_footer_branch
                  %317 = sbr.rel target = $region105
                $region110: #{_mean_pooling_classifier_impl.1} parent=95 // loop_exit
                  _
              $region96: #{_mean_pooling_classifier_impl.1} parent=80 // pred_fallthru
                _
            $region81: #{_mean_pooling_classifier_impl.1} parent=76 // pred_fallthru
              _
            // Predicated region
            $region82: #{_mean_pooling_classifier_impl.1} parent=76 // pred_check
              _
            $region83: #{_mean_pooling_classifier_impl.1} parent=76 // pred_check_branch
              %288 = sbr.rel (0) target = $region85
            $region84: #{_mean_pooling_classifier_impl.1} parent=76 // pred_region
              loop: start=0, step=1, limit=1
              $region86: #{_mean_pooling_classifier_impl.1} parent=84 // loop_pre_header
                _
              $region87: #{_mean_pooling_classifier_impl.1} parent=84 // loop_header
                %s291 = sphi 0, %s295
                %p292 = scmp.ge.s32.totalorder %s291, 1
                %s296 = sphi %s282, %s282
                %s297 = sphi %s276, %s276
              $region88: #{_mean_pooling_classifier_impl.1} parent=84 // loop_header_branch
                %294 = sbr.rel (%p292) target = $region92
              $region89: #{_mean_pooling_classifier_impl.1} parent=84 // loop_body
                %v298 = vld [vmem:[%s296] sm:$0xf]
                %299 = vst [vmem:[%s297] sm:$0xf] %v298
                %v300 = vld [vmem:[%s296 + $0x4] sm:$0xf]
                %301 = vst [vmem:[%s297 + $0x4] sm:$0xf] %v300
                %v302 = vld [vmem:[%s296 + $0x10] sm:$0xf]
                %303 = vst [vmem:[%s297 + $0x8] sm:$0xf] %v302
                %v304 = vld [vmem:[%s296 + $0x14] sm:$0xf]
                %305 = vst [vmem:[%s297 + $0xc] sm:$0xf] %v304
              $region90: #{_mean_pooling_classifier_impl.1} parent=84 // loop_footer
                %s295 = sadd.s32 1, %s291
              $region91: #{_mean_pooling_classifier_impl.1} parent=84 // loop_footer_branch
                %290 = sbr.rel target = $region87
              $region92: #{_mean_pooling_classifier_impl.1} parent=84 // loop_exit
                _
            $region85: #{_mean_pooling_classifier_impl.1} parent=76 // pred_fallthru
              _
          $region77: #{_mean_pooling_classifier_impl.1} parent=72 // pred_fallthru
            _
          %333 = vnop
        $region73: #{_mean_pooling_classifier_impl.1} parent=27 // pred_fallthru
          _
      $region28: #{_mean_pooling_classifier_impl.1} parent=5 // pred_fallthru
        _
      %p334 = scmp.le.s32.totalorder 1, %s12
      %p335 = scmp.lt.s32.totalorder %s12, 3
      %p336 = pnand %p334, %p335
      %p337 = pneg %p336
      // Predicated region
      $region111: #{_mean_pooling_classifier_impl.1} parent=5 // pred_check
        _
      $region112: #{_mean_pooling_classifier_impl.1} parent=5 // pred_check_branch
        %339 = sbr.rel (%p336) target = $region114
      $region113: #{_mean_pooling_classifier_impl.1} parent=5 // pred_region
        %s340 = ssub.s32 %s12, 1
        %s341 = sand.u32 %s39, 1
        %s342 = sand.u32 %s39, 1
        %s343 = smul.addr %s342, 16
        %s344 = scalar_lea.vmem [#allocation3], %s343
        // Predicated region
        $region115: #{_mean_pooling_classifier_impl.1} parent=113 // pred_check
          %p345 = pneg %p52
        $region116: #{_mean_pooling_classifier_impl.1} parent=113 // pred_check_branch
          %347 = sbr.rel (%p345) target = $region118
        $region117: #{_mean_pooling_classifier_impl.1} parent=113 // pred_region
          _
        $region118: #{_mean_pooling_classifier_impl.1} parent=113 // pred_fallthru
          _
        %s348 = sand.u32 %s67, 1
        %s349 = sand.u32 %s67, 1
        %s350 = smul.addr %s349, 16
        %s351 = scalar_lea.vmem [#allocation4], %s350
        // Predicated region
        $region119: #{_mean_pooling_classifier_impl.1} parent=113 // pred_check
          %p352 = pneg %p80
        $region120: #{_mean_pooling_classifier_impl.1} parent=113 // pred_check_branch
          %354 = sbr.rel (%p352) target = $region122
        $region121: #{_mean_pooling_classifier_impl.1} parent=113 // pred_region
          _
        $region122: #{_mean_pooling_classifier_impl.1} parent=113 // pred_fallthru
          _
        %s355 = sand.u32 %s39, 1
        %s356 = sand.u32 %s39, 1
        %s357 = smul.addr %s356, 16
        %s358 = scalar_lea.vmem [#allocation3], %s357
        %p359 = pneg %p52
        %p360 = pneg %p49
        %s361 = sand.u32 %s67, 1
        %s362 = sand.u32 %s67, 1
        %s363 = smul.addr %s362, 16
        %s364 = scalar_lea.vmem [#allocation4], %s363
        %p365 = pneg %p80
        %p366 = pneg %p77
        %p367 = scmp.lt.s32.totalorder %s21, 0
        %s368 = scalar_select %p367, %s21, 0
        %s369 = smul.addr %s368, 2
        %s370 = scalar_lea.vmem %s2, %s369
        %p371 = pneg %p106
        %p372 = pneg %p103
        %p373 = pneg %p127
        %p374 = pneg %p124
        %p375 = pneg %p148
        %p376 = pneg %p145
        %p377 = pneg %p174
        %p378 = pneg %p171
        %s379 = smul.u32 2, %s21
        %s380 = smul.u32 2, %s22
        %s381 = smul.u32 2, %s21
        %s382 = smul.u32 2, %s22
        %p383 = scmp.lt.s32.totalorder %s21, 0
        %s384 = scalar_select %p383, %s21, 0
        %s385 = smul.addr %s384, 2
        %s386 = scalar_lea.vmem %s2, %s385
        %p388 = scmp.eq.s32.totalorder %s22, 0
        // Predicated region
        $region123: #{_mean_pooling_classifier_impl.1} parent=113 // pred_check
          %p389 = pneg %p388
        $region124: #{_mean_pooling_classifier_impl.1} parent=113 // pred_check_branch
          %391 = sbr.rel (%p389) target = $region126
        $region125: #{_mean_pooling_classifier_impl.1} parent=113 // pred_region
          %vm392 = vcmask 254976
          %393 = vst.msk [vmem:[#allocation2] sm:$0x3] %vm392, 0.0
        $region126: #{_mean_pooling_classifier_impl.1} parent=113 // pred_fallthru
          _
        %v394 = vld [vmem:[%s344] sm:$0xf]
        %v395 = vld [vmem:[%s344 + $0x4] sm:$0xf]
        %v396 = vld [vmem:[%s344 + $0x8] sm:$0xf]
        %v397 = vld [vmem:[%s344 + $0xc] sm:$0xf]
        %v398 = vld [vmem:[%s351] sm:$0xf]
        %v399 = vld [vmem:[%s351 + $0x4] sm:$0xf]
        %v400 = vld [vmem:[%s351 + $0x8] sm:$0xf]
        %v401 = vld [vmem:[%s351 + $0xc] sm:$0xf]
        %403 = vset.pattern.permute.xlu0 0
        %404 = vperm.xlu0 %403, %v398
        %v405 = vpop.permute.xlu0 %404
        %v408 = vunpack.c.l.s4 839922192
        %v409 = vunpack.c.0.s8 %v408
        %v410 = vlaneseq
        %v411 = vshrl.u32 %v410, 7
        %v412 = vsub.s32 %v409, %v411
        %v413 = vrot.slane %v405, %v412
        %415 = vset.pattern.permute.xlu0 0
        %416 = vperm.xlu0 %415, %v399
        %v417 = vpop.permute.xlu0 %416
        %v420 = vunpack.c.l.s4 839922192
        %v421 = vunpack.c.0.s8 %v420
        %v422 = vlaneseq
        %v423 = vshrl.u32 %v422, 7
        %v424 = vsub.s32 %v421, %v423
        %v425 = vrot.slane %v417, %v424
        %427 = vset.pattern.permute.xlu0 0
        %428 = vperm.xlu0 %427, %v400
        %v429 = vpop.permute.xlu0 %428
        %v432 = vunpack.c.l.s4 839922192
        %v433 = vunpack.c.0.s8 %v432
        %v434 = vlaneseq
        %v435 = vshrl.u32 %v434, 7
        %v436 = vsub.s32 %v433, %v435
        %v437 = vrot.slane %v429, %v436
        %439 = vset.pattern.permute.xlu0 0
        %440 = vperm.xlu0 %439, %v401
        %v441 = vpop.permute.xlu0 %440
        %v444 = vunpack.c.l.s4 839922192
        %v445 = vunpack.c.0.s8 %v444
        %v446 = vlaneseq
        %v447 = vshrl.u32 %v446, 7
        %v448 = vsub.s32 %v445, %v447
        %v449 = vrot.slane %v441, %v448
        %v450 = vmul.bf16 %v394, %v413
        %v451 = vmul.bf16 %v395, %v425
        %v452 = vmul.bf16 %v396, %v437
        %v453 = vmul.bf16 %v397, %v449
        %v454 = vld [vmem:[#allocation2] sm:$0x3]
        %v455 = vunpack.c.l.bf16 %v450
        %v456 = vunpack.c.l.bf16 %v451
        %v457 = vunpack.c.l.bf16 %v452
        %v458 = vunpack.c.l.bf16 %v453
        %vm459 = vcmask 261120
        %v460 = vsel %vm459, %v455, 0.0
        %v461 = vsel %vm459, %v456, 0.0
        %v462 = vadd.f32 %v460, %v461
        %v463 = vrot.slane %v462, 4
        %v464 = vadd.f32 %v462, %v463
        %v465 = vrot.slane %v464, 2
        %v466 = vadd.f32 %v464, %v465
        %v467 = vrot.slane %v466, 1
        %v468 = vadd.f32 %v466, %v467
        %v469 = vsel %vm459, %v457, 0.0
        %v470 = vsel %vm459, %v458, 0.0
        %v471 = vadd.f32 %v469, %v470
        %v472 = vrot.slane %v471, 4
        %v473 = vadd.f32 %v471, %v472
        %v474 = vrot.slane %v473, 2
        %v475 = vadd.f32 %v473, %v474
        %v476 = vrot.slane %v475, 1
        %v477 = vadd.f32 %v475, %v476
        %vm480 = vcmask 1041409
        %v481 = vsel %vm480, %v477, %v468
        %v483 = vadd.f32 %v454, %v481
        %vm484 = vcmask 254976
        %485 = vst.msk [vmem:[#allocation2] sm:$0x3] %vm484, %v483
        %p486 = scmp.eq.s32.totalorder %s22, 1
        // Predicated region
        $region127: #{_mean_pooling_classifier_impl.1} parent=113 // pred_check
          %p487 = pneg %p486
        $region128: #{_mean_pooling_classifier_impl.1} parent=113 // pred_check_branch
          %489 = sbr.rel (%p487) target = $region130
        $region129: #{_mean_pooling_classifier_impl.1} parent=113 // pred_region
          %v490 = vld [vmem:[%s386] sm:$0x3]
          %v491 = vmax.f32 %v490, 1e-09
          %v492 = vld [vmem:[#allocation2] sm:$0x3]
          %v493 = vrcp.pop %v491
          %495 = vset.pattern.permute.xlu0 0
          %496 = vperm.xlu0 %495, %v493
          %v497 = vpop.permute.xlu0 %496
          %v499 = vmul.f32 %v492, %v497
          %v500 = vpack.c.bf16 %v499, %v499
          %v501 = vld [vmem:[%s3] sm:$0xf]
          %v502 = vld [vmem:[%s3 + $0x4] sm:$0xf]
          %v503 = vld [vmem:[%s3 + $0x8] sm:$0xf]
          %v504 = vld [vmem:[%s3 + $0xc] sm:$0xf]
          %v505 = vld [vmem:[%s4] sm:$0x1]
          %v507 = vlaneseq
          %v508 = vshrl.u32 %v507, 7
          %v509 = vsub.s32 0, %v508
          %v510 = vrot.slane %v505, %v509
          %v516 = vunpack.c.l.b16 %v501
          %v517 = vunpack.c.l.b16 %v502
          %v518 = vunpack.c.l.b16 %v503
          %v519 = vunpack.c.l.b16 %v504
          %v520 = vpack.c.b16 %v517, %v516
          %v521 = vpack.c.b16 %v519, %v518
          %v525 = vsel %vm459, %v500, 0
          %527 = vmatprep.subr.bf16.mxu0 0
          %528 = vmatpush1.bf16.msra.mxu0 %v520
          %529 = vmatprep.subr.bf16.mxu0 0
          %530 = vmatpush1.bf16.msra.mxu0 %v521
          %531 = vmatprep.subr.bf16.mxu0 0
          %532 = vmatpush1.bf16.msra.mxu0 0
          %533 = vmatprep.subr.bf16.mxu0 0
          %534 = vmatpush1.bf16.msra.mxu0 0
          %535 = vmatprep.subr.bf16.mxu0 0
          %536 = vmatpush1.bf16.msra.mxu0 0
          %537 = vmatprep.subr.bf16.mxu0 0
          %538 = vmatpush1.bf16.msra.mxu0 0
          %539 = vmatprep.subr.bf16.mxu0 0
          %540 = vmatpush1.bf16.msra.mxu0 0
          %541 = vmatprep.subr.bf16.mxu0 0
          %542 = vmatpush1.bf16.msra.mxu0 0
          %543 = vmatprep.subr.bf16.mxu0 0
          %544 = vmatpush1.bf16.msra.mxu0 0
          %545 = vmatprep.subr.bf16.mxu0 0
          %546 = vmatpush1.bf16.msra.mxu0 0
          %547 = vmatprep.subr.bf16.mxu0 0
          %548 = vmatpush1.bf16.msra.mxu0 0
          %549 = vmatprep.subr.bf16.mxu0 0
          %550 = vmatpush1.bf16.msra.mxu0 0
          %551 = vmatprep.subr.bf16.mxu0 0
          %552 = vmatpush1.bf16.msra.mxu0 0
          %553 = vmatprep.subr.bf16.mxu0 0
          %554 = vmatpush1.bf16.msra.mxu0 0
          %555 = vmatprep.subr.bf16.mxu0 0
          %556 = vmatpush1.bf16.msra.mxu0 0
          %557 = vmatprep.subr.bf16.mxu0 0
          %558 = vmatpush1.bf16.msra.mxu0 0
          %559 = vmatprep.mubr.bf16.mxu0 0
          %560 = vmatmul.mubr.bf16.gmra.mrb[0].mxu0 %v525
          %v561 = vpop.f32.mrb[0].mxu0
          %v562 = vadd.f32 %v510, %v561
          %v563 = vpop.f32.mrb[0].mxu0
          %v564 = vpop.f32.mrb[0].mxu0
          %v565 = vpop.f32.mrb[0].mxu0
          %566 = vdwg.mxu0
          %567 = vst [vmem:[#allocation5] sm:$0x3] %v562
        $region130: #{_mean_pooling_classifier_impl.1} parent=113 // pred_fallthru
          _
        // Predicated region
        $region131: #{_mean_pooling_classifier_impl.1} parent=113 // pred_check
          %p568 = pneg %p171
        $region132: #{_mean_pooling_classifier_impl.1} parent=113 // pred_check_branch
          %570 = sbr.rel (%p568) target = $region134
        $region133: #{_mean_pooling_classifier_impl.1} parent=113 // pred_region
          %s572 = ssub.s32 32, 32
          %573 = vsyncadd [#allocation6], %s572
          %s574 = smul.addr %s21, 32
          %s575 = scalar_lea.hbm %s5, %s574
          %s577 = sshll.u32 [#allocation5], 4
          %s578 = int_to_ptr.vmem [resolvable:$true] %s577
          %580 = dma.vmem_to_hbm [thread:$0]  %s578, 32, %s575, [#allocation6]
        $region134: #{_mean_pooling_classifier_impl.1} parent=113 // pred_fallthru
          _
        // Predicated region
        $region135: #{_mean_pooling_classifier_impl.1} parent=113 // pred_check
          %p581 = pneg %p171
        $region136: #{_mean_pooling_classifier_impl.1} parent=113 // pred_check_branch
          %583 = sbr.rel (%p581) target = $region138
        $region137: #{_mean_pooling_classifier_impl.1} parent=113 // pred_region
          %584 = dma.done [#allocation6], 32
        $region138: #{_mean_pooling_classifier_impl.1} parent=113 // pred_fallthru
          _
      $region114: #{_mean_pooling_classifier_impl.1} parent=5 // pred_fallthru
        _
      %p585 = scmp.le.s32.totalorder 2, %s12
      // Predicated region
      $region139: #{_mean_pooling_classifier_impl.1} parent=5 // pred_check
        %p586 = pneg %p585
      $region140: #{_mean_pooling_classifier_impl.1} parent=5 // pred_check_branch
        %588 = sbr.rel (%p586) target = $region142
      $region141: #{_mean_pooling_classifier_impl.1} parent=5 // pred_region
        %s589 = ssub.s32 %s12, 2
      $region142: #{_mean_pooling_classifier_impl.1} parent=5 // pred_fallthru
        _
    $region6: #{_mean_pooling_classifier_impl.1} parent=1 // loop_footer
      %s16 = sadd.s32 1, %s12
    $region7: #{_mean_pooling_classifier_impl.1} parent=1 // loop_footer_branch
      %11 = sbr.rel target = $region3
    $region8: #{_mean_pooling_classifier_impl.1} parent=1 // loop_exit
      _
    %590 = vsyncpa [#allocation6], 1
    %s591 = scalar_lea.sflag [#allocation6], 1
    %592 = vsyncpa %s591, 1

</llo_original>
